<compile_context>
chip_gen: v5e
topology: v5e:2x2
jax: 0.10.0
libtpu: 0.0.40
codegen_flags: <defaults>
</compile_context>

<pallas_src>
import jax
import jax.numpy as jnp
from jax.experimental import pallas as pl
from jax.experimental.pallas import tpu as pltpu


def _round_up(x: int, m: int) -> int:
    return ((x + m - 1) // m) * m


def _choose_row_tile(M: int, tm_target: int, row_align: int):
    """Pick (tm, M_pad): tm is a multiple of row_align, <= tm_target, preferably a
    divisor of M with an even grid of >= 2 steps (megacore / 2-TC friendly)."""
    tm_target = max(row_align, min(tm_target, _round_up(M, row_align)))
    tm_target = _round_up(tm_target, row_align)

    best_div = None       # divisor of M, grid >= 2 (odd)
    best_div_any = None   # any divisor of M (grid may be 1)
    tm = tm_target
    while tm >= row_align:
        if M % tm == 0:
            g = M // tm
            if g >= 2 and g % 2 == 0:
                return tm, M                       # even grid, no padding/slicing
            if best_div is None and g >= 2:
                best_div = tm
            if best_div_any is None:
                best_div_any = tm
        tm -= row_align
    if best_div is not None:
        return best_div, M
    if best_div_any is not None:
        return best_div_any, M
    # No aligned divisor: pad M.  Keep the grid >= 2 when M spans > 1 tile.
    tm = tm_target
    M_pad = _round_up(M, tm)
    if M_pad // tm == 1 and M > row_align:
        tm = _round_up(_round_up(M, row_align) // 2, row_align)
        M_pad = _round_up(M, tm)
    return tm, M_pad


def _patch_proj_kernel(x_ref, w_ref, b_ref, o_ref):
    # x_ref: (tm, Kp) compute dtype, w_ref: (Kp, Np) compute dtype,
    # b_ref: (1, Np) f32, o_ref: (tm, Np) out dtype (bf16 by default).
    acc = jnp.dot(x_ref[...], w_ref[...], preferred_element_type=jnp.float32)
    o_ref[...] = (acc + b_ref[...]).astype(o_ref.dtype)


def patch_proj_pallas(patches, weight_2d, bias_2d, *, tm_target=1024,
                      out_dtype=jnp.bfloat16):
    """patches: (M, K); weight_2d: (Kp, Np); bias_2d: (1, Np) f32 -> (M_pad, Np).

    Kp/Np must be multiples of 128 (init pads the weight; this function zero-pads
    the patch columns K -> Kp).  Any M is accepted: a divisor row-tile is chosen
    when possible, otherwise M is padded (caller slices the valid rows/cols once).
    tm_target=1024 is safe on all generations; v5e/v6e can use 2048.
    """
    M, K = patches.shape
    Kp, Np = weight_2d.shape
    assert Kp % 128 == 0 and Np % 128 == 0 and Kp >= K

    x_bytes = jnp.dtype(patches.dtype).itemsize
    w_bytes = jnp.dtype(weight_2d.dtype).itemsize
    o_bytes = jnp.dtype(out_dtype).itemsize

    # Sublane alignment of the row tile: 16 rows for 16-bit dtypes, 8 for f32.
    row_align = 16 if min(x_bytes, o_bytes) == 2 else 8
    tm, M_pad = _choose_row_tile(M, tm_target, row_align)

    if (M_pad != M) or (Kp != K):
        patches = jnp.pad(patches, ((0, M_pad - M), (0, Kp - K)))

    # Double-buffered x/out tiles; weight/bias are fetched once (constant
    # index_map) but budget 2x to stay conservative; margin for f32 temporaries
    # and compiler-internal scratch.  Capped well below v7x's 64 MiB VMEM.
    vmem_est = (2 * tm * Kp * x_bytes + 2 * (Kp * Np * w_bytes + Np * 4)
                + 2 * tm * Np * o_bytes + 2 * tm * Np * 4)
    vmem_limit = int(min(max(vmem_est + (4 << 20), 16 << 20), 48 << 20))

    cost = pl.CostEstimate(
        flops=2 * M_pad * Kp * Np,
        transcendentals=0,
        bytes_accessed=(M_pad * Kp * x_bytes + Kp * Np * w_bytes + Np * 4
                        + M_pad * Np * o_bytes),
    )

    out = pl.pallas_call(
        _patch_proj_kernel,
        out_shape=jax.ShapeDtypeStruct((M_pad, Np), out_dtype),
        grid_spec=pltpu.PrefetchScalarGridSpec(
            num_scalar_prefetch=0,
            grid=(M_pad // tm,),
            in_specs=[
                pl.BlockSpec((tm, Kp), lambda i: (i, 0)),
                pl.BlockSpec((Kp, Np), lambda i: (0, 0)),
                pl.BlockSpec((1, Np), lambda i: (0, 0)),
            ],
            out_specs=pl.BlockSpec((tm, Np), lambda i: (i, 0)),
        ),
        compiler_params=pltpu.CompilerParams(
            dimension_semantics=("parallel",),
            vmem_limit_bytes=vmem_limit,
            # Let XLA fuse the patchify (transpose/cast/pad) producing `patches`
            # into the kernel input instead of a standalone HBM pass.
            allow_input_fusion=[True, False, False],
        ),
        cost_estimate=cost,
    )(patches, weight_2d, bias_2d)
    return out


class PatchEmbedPallas:
    """Image-to-patch embedding, matching timesformer PatchEmbed.forward."""

    def __init__(self, img_size=16, patch_size=4, in_chans=4, embed_dim=32,
                 key=None, compute_dtype=jnp.bfloat16, out_dtype=jnp.bfloat16,
                 tm_target=1024):
        self.img_size = (img_size, img_size)
        self.patch_size = (patch_size, patch_size)
        self.num_patches = (img_size // patch_size) * (img_size // patch_size)
        self.in_chans = in_chans
        self.embed_dim = embed_dim
        self.compute_dtype = compute_dtype
        self.out_dtype = out_dtype
        self.tm_target = tm_target

        if key is None:
            key = jax.random.PRNGKey(0)
        kw, kb = jax.random.split(key)
        # Deterministic init (stand-in for the nn.Conv2d default init).
        self.weight = (
            jax.random.normal(kw, (embed_dim, in_chans, patch_size, patch_size), jnp.float32)
            * 0.02
        )
        self.bias = jax.random.normal(kb, (embed_dim,), jnp.float32) * 0.02

        # Precompute GEMM operands once: weight flattened (c, ph, pw)-major ->
        # (K, N); K and N zero-padded up to multiples of 128 (lane-dense loads,
        # full MXU passes, unmasked stores); cast to the MXU compute dtype.
        K = in_chans * patch_size * patch_size
        self._k_pad = _round_up(K, 128)
        self._n_pad = _round_up(embed_dim, 128)
        w2d = self.weight.reshape(embed_dim, K).T                        # (K, N)
        w2d = jnp.pad(w2d, ((0, self._k_pad - K), (0, self._n_pad - embed_dim)))
        self._w2d = w2d.astype(compute_dtype)
        bias2d = jnp.pad(self.bias, (0, self._n_pad - embed_dim)).reshape(1, self._n_pad)
        self._bias2d = bias2d.astype(jnp.float32)

    def __call__(self, x):
        # x: (B, C, T, H, W) float32
        B, C, T, H, W = x.shape
        P = self.patch_size[0]
        assert H == self.img_size[0] and W == self.img_size[1], (
            f"Input image size ({H}*{W}) doesn't match model "
            f"({self.img_size[0]}*{self.img_size[1]})."
        )
        Hn, Wn = H // P, W // P
        M = B * T * Hn * Wn

        # 'b c t h w -> (b t hn wn) (c ph pw)' in a single transpose, matching
        # Conv2d(stride=kernel) patch flattening.  Cast to bf16 here (half the
        # bytes); the whole chain is offered to XLA for fusion into the kernel's
        # input via allow_input_fusion.
        xp = x.reshape(B, C, T, Hn, P, Wn, P)
        xp = jnp.transpose(xp, (0, 2, 3, 5, 1, 4, 6))        # (B, T, Hn, Wn, C, P, P)
        patches = xp.reshape(M, C * P * P).astype(self.compute_dtype)

        out = patch_proj_pallas(patches, self._w2d, self._bias2d,
                                tm_target=self.tm_target,
                                out_dtype=self.out_dtype)     # (M_pad, Np)
        if out.shape[0] != M or out.shape[1] != self.embed_dim:
            out = out[:M, :self.embed_dim]                    # single slice if needed
        out = out.reshape(B * T, Hn * Wn, self.embed_dim)
        return out, T, Wn


if __name__ == "__main__":
    key = jax.random.PRNGKey(0)
    k_x, k_p = jax.random.split(key)

    # Small shapes consistent with the module: img 16x16, patch 4, C=4, embed_dim=32.
    B, C, T, H, W = 2, 4, 2, 16, 16
    x = jax.random.normal(k_x, (B, C, T, H, W), jnp.float32)

    model = PatchEmbedPallas(img_size=16, patch_size=4, in_chans=C, embed_dim=32, key=k_p)
    out, T_out, W_out = model(x)
    out = jax.block_until_ready(out)

    # Sanity check against a pure-JAX conv reference (same semantics as nn.Conv2d).
    x_bt = jnp.transpose(x, (0, 2, 1, 3, 4)).reshape(B * T, C, H, W)
    ref = jax.lax.conv_general_dilated(
        x_bt, model.weight, window_strides=model.patch_size, padding="VALID",
        dimension_numbers=("NCHW", "OIHW", "NCHW"),
    ) + model.bias.reshape(1, -1, 1, 1)
    ref = ref.reshape(B * T, model.embed_dim, -1).transpose(0, 2, 1)

    assert out.shape == (B * T, model.num_patches, model.embed_dim)
    assert T_out == T and W_out == W // model.patch_size[1]
    # bf16 operands + bf16 output with f32 accumulation -> loosened tolerance.
    assert jnp.allclose(out.astype(jnp.float32), ref, atol=2e-2, rtol=2e-2)

    print("KERNEL_OK")
</pallas_src>

<mosaic_0001>
module attributes {stable_mosaic.version = 11 : i64} {
  func.func @_patch_proj_kernel(%arg0: i32, %arg1: memref<32x128xbf16, #tpu.memory_space<vmem>>, %arg2: memref<128x128xbf16, #tpu.memory_space<vmem>>, %arg3: memref<1x128xf32, #tpu.memory_space<vmem>>, %arg4: memref<32x128xbf16, #tpu.memory_space<vmem>>) attributes {dimension_semantics = [#tpu.dimension_semantics<parallel>], iteration_bounds = array<i64: 2>, scalar_prefetch = 0 : i64, scratch_operands = 0 : i64, tpu.core_type = #tpu.core_type<tc>, window_params = [{transform_indices = @transform_0, window_bounds = array<i64: 32, 128>}, {pipeline_mode = #tpu.pipeline_mode<synchronous>, transform_indices = @transform_1, window_bounds = array<i64: 128, 128>}, {pipeline_mode = #tpu.pipeline_mode<synchronous>, transform_indices = @transform_2, window_bounds = array<i64: 1, 128>}, {transform_indices = @transform_3, window_bounds = array<i64: 32, 128>}]} {
    %c0 = arith.constant 0 : index
    %c0_0 = arith.constant 0 : index
    %0 = vector.load %arg1[%c0, %c0_0] : memref<32x128xbf16, #tpu.memory_space<vmem>>, vector<32x128xbf16>
    %c0_1 = arith.constant 0 : index
    %c0_2 = arith.constant 0 : index
    %1 = vector.load %arg2[%c0_1, %c0_2] : memref<128x128xbf16, #tpu.memory_space<vmem>>, vector<128x128xbf16>
    %cst = arith.constant dense<0.000000e+00> : vector<32x128xf32>
    %2 = tpu.matmul %0, %1, %cst {dimension_numbers = #tpu.dot_dimension_numbers<[1], [0], [0], [1], [0, 0, 1, 1], [], []>} : vector<32x128xbf16>, vector<128x128xbf16>, vector<32x128xf32> -> vector<32x128xf32>
    %c0_3 = arith.constant 0 : index
    %c0_4 = arith.constant 0 : index
    %3 = vector.load %arg3[%c0_3, %c0_4] : memref<1x128xf32, #tpu.memory_space<vmem>>, vector<1x128xf32>
    %4 = vector.broadcast %3 : vector<1x128xf32> to vector<32x128xf32>
    %5 = arith.addf %2, %4 : vector<32x128xf32>
    %6 = arith.truncf %5 : vector<32x128xf32> to vector<32x128xbf16>
    %c0_5 = arith.constant 0 : index
    %c0_6 = arith.constant 0 : index
    %7 = vector.load %arg4[%c0_5, %c0_6] : memref<32x128xbf16, #tpu.memory_space<vmem>>, vector<32x128xbf16>
    tpu.vector_store %arg4[%c0_5, %c0_6], %6 {strides = array<i32>} : memref<32x128xbf16, #tpu.memory_space<vmem>>, vector<32x128xbf16>,
    return
  }
  func.func @transform_0(%arg0: i32) -> (i32, i32) {
    %c0_i32 = arith.constant 0 : i32
    %c0_i32_0 = arith.constant 0 : i32
    return %arg0, %c0_i32 : i32, i32
  }
  func.func @transform_1(%arg0: i32) -> (i32, i32) {
    %c0_i32 = arith.constant 0 : i32
    %c0_i32_0 = arith.constant 0 : i32
    %c0_i32_1 = arith.constant 0 : i32
    return %c0_i32, %c0_i32_0 : i32, i32
  }
  func.func @transform_2(%arg0: i32) -> (i32, i32) {
    %c0_i32 = arith.constant 0 : i32
    %c0_i32_0 = arith.constant 0 : i32
    %c0_i32_1 = arith.constant 0 : i32
    return %c0_i32, %c0_i32_0 : i32, i32
  }
  func.func @transform_3(%arg0: i32) -> (i32, i32) {
    %c0_i32 = arith.constant 0 : i32
    %c0_i32_0 = arith.constant 0 : i32
    return %arg0, %c0_i32 : i32, i32
  }
}

</mosaic_0001>

<llo_original>
// kernel: tpu_custom_call.1
$region0: #{tpu_custom_call.1}
  #allocation0 [shape = 'u32[]', space=smem, size = 0x4, offset = 0x4, fixed_abs, tag = 'smem constant byte address 0x4 - core index']
  #allocation1 [shape = 'u32[72,128]{1,0:T(1,128)}', space=vmem, size = 0x9000, scoped, tag = 'internal scratch']
  %s0 = inlined_call_operand.hbm [shape: bf16[64,128], index: 0, kind: input, shape index: {}]
  %s1 = inlined_call_operand.hbm [shape: bf16[128,128], index: 1, kind: input, shape index: {}]
  %s2 = inlined_call_operand.vmem [shape: f32[1,128], index: 2, kind: input, shape index: {}]
  %s3 = inlined_call_operand.hbm [shape: bf16[64,128], index: 3, kind: output, shape index: {}]
  %s4 = sld [smem:[#allocation0]]
  $region53: #{tpu_custom_call.1} parent=0
    _
  %s6 = ssub.s32 1, %s4
  %s7 = scalar_select 0, %s6, %s4
  $region1: #{tpu_custom_call.1} parent=0
    #allocation2 [shape = 'u8[16384]{0}', space=vmem, size = 0x4000, scoped, tag = 'input window, operand 0']
    #allocation3 [shape = 's32[2]{0}', space=sflag, size = 0x8, scoped, tag = 'scoped memory for tpu_custom_call.1']
    #allocation4 [shape = 's32[2]{0}', space=sflag, size = 0x8, scoped, tag = 'scoped memory for tpu_custom_call.1']
    #allocation5 [shape = 'u8[32768]{0}', space=vmem, size = 0x8000, scoped, tag = 'input window, operand 1, single buffered']
    #allocation6 [shape = 's32[1]{0}', space=sflag, size = 0x4, scoped, tag = 'scoped memory for tpu_custom_call.1']
    #allocation7 [shape = 'u8[16384]{0}', space=vmem, size = 0x4000, scoped, tag = 'output window, operand 0']
    %8 = vsyncpa [#allocation3], 0
    %s9 = scalar_lea.sflag [#allocation3], 1
    %10 = vsyncpa %s9, 0
    %11 = vsyncpa [#allocation6], 0
    %12 = vsyncpa [#allocation4], 0
    %s13 = scalar_lea.sflag [#allocation4], 1
    %14 = vsyncpa %s13, 0
    loop: start=0, step=1, limit=4
    $region2: #{tpu_custom_call.1} parent=1 // loop_pre_header
      _
    $region3: #{tpu_custom_call.1} parent=1 // loop_header
      %s16 = sphi 0, %s20
      %p17 = scmp.ge.s32.totalorder %s16, 4
      %s26 = sphi 0, %s28
      %s29 = sphi 0, %s26
      %s30 = sphi 0, %s29
      %s46 = sphi 0, %s30
      %s50 = sphi 0, %s50
      %s52 = sphi 0, %s50
      %s53 = sphi 0, %s52
      %s67 = sphi 0, %s53
      %s71 = sphi 0, %s71
      %s73 = sphi 0, %s71
      %s74 = sphi 0, %s73
      %s88 = sphi 0, %s74
      %s94 = sphi 0, %s96
      %s97 = sphi 0, %s94
      %s98 = sphi 0, %s97
      %s114 = sphi 0, %s98
    $region4: #{tpu_custom_call.1} parent=1 // loop_header_branch
      %19 = sbr.rel (%p17) target = $region8
    $region5: #{tpu_custom_call.1} parent=1 // loop_body
      %s21 = ssub.s32 %s16, 1
      %s22 = ssub.s32 %s16, 2
      %s23 = sadd.s32 %s16, 1
      %s24 = ssub.s32 %s16, %s23
      %p25 = scmp.eq.s32.totalorder %s24, 0
      %s27 = sadd.s32 %s26, 1
      %s28 = scalar_select %p25, %s26, %s27
      %p31 = pneg %p25
      %p32 = scmp.eq.s32.totalorder %s16, 1
      %p33 = por %p31, %p32
      %p34 = scmp.ne.s32.totalorder %s26, %s29
      %p35 = scmp.eq.s32.totalorder %s16, 0
      %p36 = por %p34, %p35
      %p37 = scmp.ne.s32.totalorder %s26, %s29
      %p38 = scmp.eq.s32.totalorder %s21, 1
      %p39 = por %p37, %p38
      %p40 = scmp.ne.s32.totalorder %s29, %s30
      %p41 = scmp.eq.s32.totalorder %s21, 0
      %p42 = por %p40, %p41
      %p43 = scmp.ne.s32.totalorder %s29, %s30
      %p44 = scmp.eq.s32.totalorder %s22, 1
      %p45 = por %p43, %p44
      %p47 = scmp.ne.s32.totalorder %s30, %s46
      %p48 = scmp.eq.s32.totalorder %s22, 0
      %p49 = por %p47, %p48
      %s51 = sadd.s32 %s50, 1
      %p54 = scmp.eq.s32.totalorder %s16, 1
      %p55 = scmp.ne.s32.totalorder %s50, %s52
      %p56 = scmp.eq.s32.totalorder %s16, 0
      %p57 = por %p55, %p56
      %p58 = scmp.ne.s32.totalorder %s50, %s52
      %p59 = scmp.eq.s32.totalorder %s21, 1
      %p60 = por %p58, %p59
      %p61 = scmp.ne.s32.totalorder %s52, %s53
      %p62 = scmp.eq.s32.totalorder %s21, 0
      %p63 = por %p61, %p62
      %p64 = scmp.ne.s32.totalorder %s52, %s53
      %p65 = scmp.eq.s32.totalorder %s22, 1
      %p66 = por %p64, %p65
      %p68 = scmp.ne.s32.totalorder %s53, %s67
      %p69 = scmp.eq.s32.totalorder %s22, 0
      %p70 = por %p68, %p69
      %s72 = sadd.s32 %s71, 1
      %p75 = scmp.eq.s32.totalorder %s16, 1
      %p76 = scmp.ne.s32.totalorder %s71, %s73
      %p77 = scmp.eq.s32.totalorder %s16, 0
      %p78 = por %p76, %p77
      %p79 = scmp.ne.s32.totalorder %s71, %s73
      %p80 = scmp.eq.s32.totalorder %s21, 1
      %p81 = por %p79, %p80
      %p82 = scmp.ne.s32.totalorder %s73, %s74
      %p83 = scmp.eq.s32.totalorder %s21, 0
      %p84 = por %p82, %p83
      %p85 = scmp.ne.s32.totalorder %s73, %s74
      %p86 = scmp.eq.s32.totalorder %s22, 1
      %p87 = por %p85, %p86
      %p89 = scmp.ne.s32.totalorder %s74, %s88
      %p90 = scmp.eq.s32.totalorder %s22, 0
      %p91 = por %p89, %p90
      %s92 = ssub.s32 %s16, %s23
      %p93 = scmp.eq.s32.totalorder %s92, 0
      %s95 = sadd.s32 %s94, 1
      %s96 = scalar_select %p93, %s94, %s95
      %p99 = pneg %p93
      %p100 = scmp.eq.s32.totalorder %s16, 1
      %p101 = por %p99, %p100
      %p102 = scmp.ne.s32.totalorder %s94, %s97
      %p103 = scmp.eq.s32.totalorder %s16, 0
      %p104 = por %p102, %p103
      %p105 = scmp.ne.s32.totalorder %s94, %s97
      %p106 = scmp.eq.s32.totalorder %s21, 1
      %p107 = por %p105, %p106
      %p108 = scmp.ne.s32.totalorder %s97, %s98
      %p109 = scmp.eq.s32.totalorder %s21, 0
      %p110 = por %p108, %p109
      %p111 = scmp.ne.s32.totalorder %s97, %s98
      %p112 = scmp.eq.s32.totalorder %s22, 1
      %p113 = por %p111, %p112
      %p115 = scmp.ne.s32.totalorder %s98, %s114
      %p116 = scmp.eq.s32.totalorder %s22, 0
      %p117 = por %p115, %p116
      %p118 = scmp.le.s32.totalorder 1, %s16
      %p119 = scmp.lt.s32.totalorder %s16, 3
      %p120 = pnand %p118, %p119
      %p121 = pneg %p120
      // Predicated region
      $region9: #{tpu_custom_call.1} parent=5 // pred_check
        _
      $region10: #{tpu_custom_call.1} parent=5 // pred_check_branch
        %123 = sbr.rel (%p120) target = $region12
      $region11: #{tpu_custom_call.1} parent=5 // pred_region
        %s124 = ssub.s32 %s16, 1
        // Predicated region
        $region13: #{tpu_custom_call.1} parent=11 // pred_check
          %p125 = pneg %p63
        $region14: #{tpu_custom_call.1} parent=11 // pred_check_branch
          %127 = sbr.rel (%p125) target = $region16
        $region15: #{tpu_custom_call.1} parent=11 // pred_region
          %129 = vsyncadd [#allocation6], 0
          %s130 = sshll.u32 %s1, 4
          %s131 = int_to_ptr.hbm [resolvable:$true] %s130
          %s132 = sshll.u32 [#allocation5], 4
          %s133 = int_to_ptr.vmem [resolvable:$true] %s132
          %138 = dma.hbm_to_vmem [thread:$0]  %s131, 1024, %s133, [#allocation6], 64, 64, 4
        $region16: #{tpu_custom_call.1} parent=11 // pred_fallthru
          _
        // Predicated region
        $region17: #{tpu_custom_call.1} parent=11 // pred_check
          %p139 = pneg %p84
        $region18: #{tpu_custom_call.1} parent=11 // pred_check_branch
          %141 = sbr.rel (%p139) target = $region20
        $region19: #{tpu_custom_call.1} parent=11 // pred_region
          _
        $region20: #{tpu_custom_call.1} parent=11 // pred_fallthru
          _
      $region12: #{tpu_custom_call.1} parent=5 // pred_fallthru
        _
      %p142 = scmp.lt.s32.totalorder %s16, 2
      // Predicated region
      $region21: #{tpu_custom_call.1} parent=5 // pred_check
        %p143 = pneg %p142
      $region22: #{tpu_custom_call.1} parent=5 // pred_check_branch
        %145 = sbr.rel (%p143) target = $region24
      $region23: #{tpu_custom_call.1} parent=5 // pred_region
        // Predicated region
        $region25: #{tpu_custom_call.1} parent=23 // pred_check
          %p146 = pneg %p36
        $region26: #{tpu_custom_call.1} parent=23 // pred_check_branch
          %148 = sbr.rel (%p146) target = $region28
        $region27: #{tpu_custom_call.1} parent=23 // pred_region
          %s149 = sand.u32 %s26, 1
          %s150 = scalar_lea.sflag [#allocation3], %s149
          %s151 = sand.u32 %s26, 1
          %s152 = smul.addr %s151, 16
          %s153 = scalar_lea.vmem [#allocation2], %s152
          %s154 = smul.u32 4, %s16
          %156 = vsyncadd %s150, 0
          %s157 = smul.addr %s154, 4
          %s158 = scalar_lea.hbm %s0, %s157
          %s159 = sshll.u32 %s158, 4
          %s160 = int_to_ptr.hbm [resolvable:$true] %s159
          %s161 = sshll.u32 %s153, 4
          %s162 = int_to_ptr.vmem [resolvable:$true] %s161
          %167 = dma.hbm_to_vmem [thread:$0]  %s160, 256, %s162, %s150, 64, 64, 4
        $region28: #{tpu_custom_call.1} parent=23 // pred_fallthru
          _
      $region24: #{tpu_custom_call.1} parent=5 // pred_fallthru
        _
      %p168 = scmp.le.s32.totalorder 1, %s16
      %p169 = scmp.lt.s32.totalorder %s16, 3
      %p170 = pnand %p168, %p169
      %p171 = pneg %p170
      // Predicated region
      $region29: #{tpu_custom_call.1} parent=5 // pred_check
        _
      $region30: #{tpu_custom_call.1} parent=5 // pred_check_branch
        %173 = sbr.rel (%p170) target = $region32
      $region31: #{tpu_custom_call.1} parent=5 // pred_region
        %s174 = ssub.s32 %s16, 1
        %s175 = sand.u32 %s29, 1
        %s176 = scalar_lea.sflag [#allocation3], %s175
        %s177 = sand.u32 %s29, 1
        %s178 = smul.addr %s177, 16
        %s179 = scalar_lea.vmem [#allocation2], %s178
        // Predicated region
        $region33: #{tpu_custom_call.1} parent=31 // pred_check
          %p180 = pneg %p42
        $region34: #{tpu_custom_call.1} parent=31 // pred_check_branch
          %182 = sbr.rel (%p180) target = $region36
        $region35: #{tpu_custom_call.1} parent=31 // pred_region
          %184 = dma.done %s176, 256
        $region36: #{tpu_custom_call.1} parent=31 // pred_fallthru
          _
        // Predicated region
        $region37: #{tpu_custom_call.1} parent=31 // pred_check
          %p185 = pneg %p63
        $region38: #{tpu_custom_call.1} parent=31 // pred_check_branch
          %187 = sbr.rel (%p185) target = $region40
        $region39: #{tpu_custom_call.1} parent=31 // pred_region
          %189 = dma.done [#allocation6], 1024
        $region40: #{tpu_custom_call.1} parent=31 // pred_fallthru
          _
        %s190 = sand.u32 %s29, 1
        %s191 = scalar_lea.sflag [#allocation3], %s190
        %s192 = sand.u32 %s29, 1
        %s193 = smul.addr %s192, 16
        %s194 = scalar_lea.vmem [#allocation2], %s193
        %p195 = pneg %p42
        %p196 = pneg %p39
        %p197 = pneg %p63
        %p198 = pneg %p60
        %p199 = pneg %p84
        %p200 = pneg %p81
        %p201 = pneg %p110
        %p202 = pneg %p107
        %s203 = sand.u32 %s97, 1
        %s204 = scalar_lea.sflag [#allocation4], %s203
        %s205 = sand.u32 %s97, 1
        %s206 = smul.addr %s205, 16
        %s207 = scalar_lea.vmem [#allocation7], %s206
        %s208 = smul.u32 4, %s21
        %s209 = smul.u32 4, %s21
        %v210 = vld [vmem:[%s179] sm:$0xf]
        %v211 = vld [vmem:[%s179 + $0x4] sm:$0xf]
        %v212 = vld [vmem:[%s179 + $0x8] sm:$0xf]
        %v213 = vld [vmem:[%s179 + $0xc] sm:$0xf]
        %v214 = vld [vmem:[#allocation5] sm:$0xf]
        %v215 = vld [vmem:[#allocation5 + $0x4] sm:$0xf]
        %v216 = vld [vmem:[#allocation5 + $0x8] sm:$0xf]
        %v217 = vld [vmem:[#allocation5 + $0xc] sm:$0xf]
        %v218 = vld [vmem:[#allocation5 + $0x10] sm:$0xf]
        %v219 = vld [vmem:[#allocation5 + $0x14] sm:$0xf]
        %v220 = vld [vmem:[#allocation5 + $0x18] sm:$0xf]
        %v221 = vld [vmem:[#allocation5 + $0x1c] sm:$0xf]
        %v222 = vld [vmem:[#allocation5 + $0x20] sm:$0xf]
        %v223 = vld [vmem:[#allocation5 + $0x24] sm:$0xf]
        %v224 = vld [vmem:[#allocation5 + $0x28] sm:$0xf]
        %v225 = vld [vmem:[#allocation5 + $0x2c] sm:$0xf]
        %v226 = vld [vmem:[#allocation5 + $0x30] sm:$0xf]
        %v227 = vld [vmem:[#allocation5 + $0x34] sm:$0xf]
        %v228 = vld [vmem:[#allocation5 + $0x38] sm:$0xf]
        %v229 = vld [vmem:[#allocation5 + $0x3c] sm:$0xf]
        %v230 = vld [vmem:[%s2] sm:$0x1]
        %v232 = vperm.slane %v230, 0
        %v238 = vunpack.c.l.b16 %v210
        %v239 = vunpack.c.l.b16 %v211
        %v240 = vunpack.c.l.b16 %v212
        %v241 = vunpack.c.l.b16 %v213
        %v242 = vpack.c.b16 %v239, %v238
        %v243 = vpack.c.b16 %v241, %v240
        %v262 = vunpack.c.l.b16 %v214
        %v263 = vunpack.c.l.b16 %v215
        %v264 = vunpack.c.l.b16 %v216
        %v265 = vunpack.c.l.b16 %v217
        %v266 = vunpack.c.l.b16 %v218
        %v267 = vunpack.c.l.b16 %v219
        %v268 = vunpack.c.l.b16 %v220
        %v269 = vunpack.c.l.b16 %v221
        %v270 = vunpack.c.l.b16 %v222
        %v271 = vunpack.c.l.b16 %v223
        %v272 = vunpack.c.l.b16 %v224
        %v273 = vunpack.c.l.b16 %v225
        %v274 = vunpack.c.l.b16 %v226
        %v275 = vunpack.c.l.b16 %v227
        %v276 = vunpack.c.l.b16 %v228
        %v277 = vunpack.c.l.b16 %v229
        %v278 = vpack.c.b16 %v263, %v262
        %v279 = vpack.c.b16 %v265, %v264
        %v280 = vpack.c.b16 %v267, %v266
        %v281 = vpack.c.b16 %v269, %v268
        %v282 = vpack.c.b16 %v271, %v270
        %v283 = vpack.c.b16 %v273, %v272
        %v284 = vpack.c.b16 %v275, %v274
        %v285 = vpack.c.b16 %v277, %v276
        %294 = vmatpush.bf16.msra.mxu0 %v285
        %295 = vmatpush.bf16.msra.mxu0 %v284
        %296 = vmatpush.bf16.msra.mxu0 %v283
        %297 = vmatpush.bf16.msra.mxu0 %v282
        %298 = vmatpush.bf16.msra.mxu0 %v281
        %299 = vmatpush.bf16.msra.mxu0 %v280
        %300 = vmatpush.bf16.msra.mxu0 %v279
        %301 = vmatpush.bf16.msra.mxu0 %v278
        %302 = vmatmul.bf16.gmra.mxu0 %v242
        %v303 = vpop.f32.mrf.mxu0
        %v304 = vadd.f32 %v232, %v303
        %v305 = vpop.f32.mrf.mxu0
        %v306 = vadd.f32 %v232, %v305
        %307 = vmatmul.bf16.gmra.mxu0 %v243
        %v308 = vpop.f32.mrf.mxu0
        %v309 = vadd.f32 %v232, %v308
        %v310 = vpop.f32.mrf.mxu0
        %v311 = vadd.f32 %v232, %v310
        %312 = vdwg.mxu0
        %v313 = vpack.c.bf16 %v304, %v304
        %v314 = vpack.c.bf16 %v306, %v306
        %v315 = vpack.c.bf16 %v309, %v309
        %v316 = vpack.c.bf16 %v311, %v311
        %317 = vst [vmem:[%s207] sm:$0xf] %v313
        %318 = vst [vmem:[%s207 + $0x4] sm:$0xf] %v314
        %319 = vst [vmem:[%s207 + $0x8] sm:$0xf] %v315
        %320 = vst [vmem:[%s207 + $0xc] sm:$0xf] %v316
        %s321 = sand.u32 %s97, 1
        %s322 = scalar_lea.sflag [#allocation4], %s321
        %s323 = sand.u32 %s97, 1
        %s324 = smul.addr %s323, 16
        %s325 = scalar_lea.vmem [#allocation7], %s324
        // Predicated region
        $region41: #{tpu_custom_call.1} parent=31 // pred_check
          %p326 = pneg %p107
        $region42: #{tpu_custom_call.1} parent=31 // pred_check_branch
          %328 = sbr.rel (%p326) target = $region44
        $region43: #{tpu_custom_call.1} parent=31 // pred_region
          %s329 = smul.u32 4, %s21
          %331 = vsyncadd %s322, 0
          %s332 = smul.addr %s329, 4
          %s333 = scalar_lea.hbm %s3, %s332
          %s334 = sshll.u32 %s325, 4
          %s335 = int_to_ptr.vmem [resolvable:$true] %s334
          %s336 = sshll.u32 %s333, 4
          %s337 = int_to_ptr.hbm [resolvable:$true] %s336
          %342 = dma.vmem_to_hbm [thread:$0]  %s335, 256, %s337, %s322, 64, 64, 4
        $region44: #{tpu_custom_call.1} parent=31 // pred_fallthru
          _
      $region32: #{tpu_custom_call.1} parent=5 // pred_fallthru
        _
      %p343 = scmp.le.s32.totalorder 2, %s16
      // Predicated region
      $region45: #{tpu_custom_call.1} parent=5 // pred_check
        %p344 = pneg %p343
      $region46: #{tpu_custom_call.1} parent=5 // pred_check_branch
        %346 = sbr.rel (%p344) target = $region48
      $region47: #{tpu_custom_call.1} parent=5 // pred_region
        %s347 = ssub.s32 %s16, 2
        // Predicated region
        $region49: #{tpu_custom_call.1} parent=47 // pred_check
          %p348 = pneg %p113
        $region50: #{tpu_custom_call.1} parent=47 // pred_check_branch
          %350 = sbr.rel (%p348) target = $region52
        $region51: #{tpu_custom_call.1} parent=47 // pred_region
          %s351 = sand.u32 %s98, 1
          %s352 = scalar_lea.sflag [#allocation4], %s351
          %s353 = sand.u32 %s98, 1
          %s354 = smul.addr %s353, 16
          %s355 = scalar_lea.vmem [#allocation7], %s354
          %357 = dma.done %s352, 256
        $region52: #{tpu_custom_call.1} parent=47 // pred_fallthru
          _
      $region48: #{tpu_custom_call.1} parent=5 // pred_fallthru
        _
    $region6: #{tpu_custom_call.1} parent=1 // loop_footer
      %s20 = sadd.s32 1, %s16
    $region7: #{tpu_custom_call.1} parent=1 // loop_footer_branch
      %15 = sbr.rel target = $region3
    $region8: #{tpu_custom_call.1} parent=1 // loop_exit
      _
    %358 = vsyncpa [#allocation3], 1
    %s359 = scalar_lea.sflag [#allocation3], 1
    %360 = vsyncpa %s359, 1
    %361 = vsyncpa [#allocation6], 1
    %362 = vsyncpa [#allocation4], 1
    %s363 = scalar_lea.sflag [#allocation4], 1
    %364 = vsyncpa %s363, 1

</llo_original>
